<compile_context>
chip_gen: v7x
topology: tpu7x:2x2x1
jax: 0.10.0
libtpu: 0.0.40
codegen_flags: <defaults>
</compile_context>

<pallas_src>
from functools import partial

import jax
import jax.numpy as jnp
from jax import lax
from jax.experimental import pallas as pl
from jax.experimental.pallas import tpu as pltpu

LANES = 128            # lane tile (last dim)
ROW_ALIGN = 32         # sublane alignment; 32 also covers int8 (32,128) tiling
MAX_BLOCK_ROWS = 8192  # 8192*128*4B = 4 MiB per f32 input block


def _focal_partial_sum_kernel(gamma, alpha, rows_valid, block_rows, needs_mask,
                              x_ref, t_ref, o_ref):
    """Binary focal loss (with logits) partial sums for one block -> (8, 128)."""
    x = x_ref[...].astype(jnp.float32)
    t = t_ref[...].astype(jnp.float32)

    # Fused sigmoid + BCE-with-logits. For one-hot targets t in {0, 1}:
    #   z        = (1 - 2t) * x
    #   ce       = BCEWithLogits(x, t) = softplus(z) = max(z, 0) + log1p(exp(-|z|))
    #   1 - pt   = sigmoid(z)
    # A single exp() is shared between ce and the focal modulation term.
    z = (1.0 - 2.0 * t) * x
    e = jnp.exp(-jnp.abs(z))
    ce = jnp.maximum(z, 0.0) + jnp.log1p(e)

    # EUP-cheap reciprocal: approx vrcp + one Newton-Raphson step on the VPU
    # restores ~f32 accuracy (approx alone is ~2^-12 rel error).
    d = 1.0 + e
    r = pl.reciprocal(d, approx=True)
    r = r * (2.0 - d * r)
    one_minus_pt = jnp.where(z >= 0.0, r, e * r)             # sigmoid(z)

    g = float(gamma)
    if g == 2.0:
        focal_term = one_minus_pt * one_minus_pt              # VPU, no transcendentals
    elif g == 1.0:
        focal_term = one_minus_pt
    elif g.is_integer():
        focal_term = lax.integer_pow(one_minus_pt, int(g))
    else:
        focal_term = one_minus_pt ** g                        # general non-integer gamma

    loss = focal_term * ce
    if alpha is not None:
        loss = loss * (alpha * t + (1.0 - alpha) * (1.0 - t))

    def partial_sum(v):
        # Reduce only along the leading vreg-group axis (cross-vreg VPU adds),
        # leaving one lane/sublane-dense (8, 128) partial-sum tile per step.
        return jnp.sum(v.reshape(block_rows // 8, 8, LANES), axis=0)

    if needs_mask:
        # Only the final (ragged) grid block contains garbage rows; gate the
        # iota/compare/select there so full blocks pay nothing.
        is_last = pl.program_id(0) == pl.num_programs(0) - 1

        @pl.when(jnp.logical_not(is_last))
        def _():
            o_ref[...] = partial_sum(loss)

        @pl.when(is_last)
        def _():
            # Row-level bound (rows_valid < 2**31 for any realistic tensor).
            row = (pl.program_id(0) * block_rows
                   + lax.broadcasted_iota(jnp.int32, loss.shape, 0))
            o_ref[...] = partial_sum(jnp.where(row < rows_valid, loss, 0.0))
    else:
        o_ref[...] = partial_sum(loss)


def _focal_elementwise_jax(x, t, *, gamma, alpha):
    """Plain-JAX focal loss for the tiny (<~1K elem) unaligned tail."""
    x = x.astype(jnp.float32)
    t = t.astype(jnp.float32)
    ce = jnp.maximum(x, 0.0) - x * t + jnp.log1p(jnp.exp(-jnp.abs(x)))
    p = jax.nn.sigmoid(x)
    pt = p * t + (1.0 - p) * (1.0 - t)
    loss = (1.0 - pt) ** gamma * ce
    if alpha is not None:
        loss = loss * (alpha * t + (1.0 - alpha) * (1.0 - t))
    return loss


def binary_focal_loss(inputs, targets, *, gamma=2.0, alpha=None, reduction="mean"):
    """inputs: [B,C,H,W] logits; targets: [B,C,H,W] one-hot OR [B,H,W] int labels."""
    if targets.ndim + 1 == inputs.ndim:
        # Integer class labels -> int8 one-hot directly in NCHW layout
        # (mirrors BinaryFocalLoss._one_hot_targets, but 1 B/elem on the wire).
        num_classes = inputs.shape[1]
        c_shape = [1] * inputs.ndim
        c_shape[1] = num_classes
        classes = jnp.arange(num_classes, dtype=targets.dtype).reshape(c_shape)
        targets = (jnp.expand_dims(targets, 1) == classes).astype(jnp.int8)
    assert inputs.shape == targets.shape

    n = inputs.size
    x = inputs.reshape(-1)
    t = targets.reshape(-1)

    # Main kernel body covers rows_main complete 128-lane rows with NO padding
    # copy; the sub-row tail (rare: n % 128 != 0, or very small inputs) is
    # summed in plain JAX.
    rows_full = n // LANES
    if rows_full < 2 * ROW_ALIGN:
        rows_main = (rows_full // 8) * 8   # keep single-block case 8-aligned
    else:
        rows_main = rows_full
    n_main = rows_main * LANES

    total = jnp.float32(0.0)

    if rows_main > 0:
        x2 = x if n_main == n else x[:n_main]
        t2 = t if n_main == n else t[:n_main]
        x2 = x2.reshape(rows_main, LANES)
        t2 = t2.reshape(rows_main, LANES)

        num_blocks = pl.cdiv(rows_main, MAX_BLOCK_ROWS)
        if num_blocks < 2 and rows_main >= 2 * ROW_ALIGN:
            num_blocks = 2                 # let v7x's two TensorCores share the grid
        if num_blocks > 1 and num_blocks % 2:
            num_blocks += 1                # keep the parallel axis balanced across 2 TCs
        block_rows = pl.cdiv(pl.cdiv(rows_main, num_blocks), ROW_ALIGN) * ROW_ALIGN
        block_rows = min(block_rows, rows_main)   # full-dim block for small inputs
        num_blocks = pl.cdiv(rows_main, block_rows)
        needs_mask = (rows_main % block_rows) != 0

        kernel = partial(_focal_partial_sum_kernel, float(gamma), alpha,
                         rows_main, block_rows, needs_mask)

        partials = pl.pallas_call(
            kernel,
            out_shape=jax.ShapeDtypeStruct((num_blocks * 8, LANES), jnp.float32),
            grid=(num_blocks,),
            in_specs=[
                pl.BlockSpec((block_rows, LANES), lambda i: (i, 0)),
                pl.BlockSpec((block_rows, LANES), lambda i: (i, 0)),
            ],
            out_specs=pl.BlockSpec((8, LANES), lambda i: (i, 0)),
            compiler_params=pltpu.CompilerParams(
                dimension_semantics=("parallel",),
                vmem_limit_bytes=32 * 1024 * 1024,
            ),
        )(x2, t2)
        total = total + jnp.sum(partials)

    if n_main != n:
        total = total + jnp.sum(
            _focal_elementwise_jax(x[n_main:], t[n_main:], gamma=gamma, alpha=alpha))

    if reduction == "mean":
        return total / jnp.float32(n)
    if reduction == "sum":
        return total
    raise ValueError(f"unsupported reduction: {reduction}")


def _reference_focal_loss(inputs, targets, gamma=2.0, alpha=None):
    """Pure-JAX reference mirroring focal_loss_with_logits defaults."""
    x = inputs.astype(jnp.float32)
    t = targets.astype(jnp.float32)
    p = jax.nn.sigmoid(x)
    ce = jnp.maximum(x, 0.0) - x * t + jnp.log1p(jnp.exp(-jnp.abs(x)))
    pt = p * t + (1.0 - p) * (1.0 - t)
    loss = (1.0 - pt) ** gamma * ce
    if alpha is not None:
        loss = loss * (alpha * t + (1.0 - alpha) * (1.0 - t))
    return loss.mean()


if __name__ == "__main__":
    B, C, H, W = 2, 4, 16, 16
    key = jax.random.PRNGKey(0)
    k_logits, k_labels = jax.random.split(key)

    logits = jax.random.normal(k_logits, (B, C, H, W), dtype=jnp.float32)

    # Integer targets [B,H,W]; the wrapper one-hot encodes them (int8, NCHW),
    # mirroring BinaryFocalLoss._one_hot_targets.
    labels = jax.random.randint(k_labels, (B, H, W), 0, C)

    loss = binary_focal_loss(logits, labels, gamma=2.0, alpha=None,
                             reduction="mean")
    loss = jax.block_until_ready(loss)

    targets_one_hot = jnp.moveaxis(jax.nn.one_hot(labels, C, dtype=jnp.float32), -1, 1)
    ref = _reference_focal_loss(logits, targets_one_hot, gamma=2.0, alpha=None)
    assert jnp.allclose(loss, ref, rtol=1e-4, atol=1e-6), (loss, ref)

    print("KERNEL_OK")
</pallas_src>

<mosaic_0001>
module attributes {stable_mosaic.version = 11 : i64} {
  func.func @_focal_partial_sum_kernel(%arg0: i32, %arg1: memref<16x128xf32, #tpu.memory_space<vmem>>, %arg2: memref<16x128xi8, #tpu.memory_space<vmem>>, %arg3: memref<8x128xf32, #tpu.memory_space<vmem>>) attributes {dimension_semantics = [#tpu.dimension_semantics<parallel>], iteration_bounds = array<i64: 1>, scalar_prefetch = 0 : i64, scratch_operands = 0 : i64, tpu.core_type = #tpu.core_type<tc>, window_params = [{transform_indices = @transform_0, window_bounds = array<i64: 16, 128>}, {transform_indices = @transform_1, window_bounds = array<i64: 16, 128>}, {transform_indices = @transform_2, window_bounds = array<i64: 8, 128>}]} {
    %c0 = arith.constant 0 : index
    %c0_0 = arith.constant 0 : index
    %0 = vector.load %arg1[%c0, %c0_0] : memref<16x128xf32, #tpu.memory_space<vmem>>, vector<16x128xf32>
    %c0_1 = arith.constant 0 : index
    %c0_2 = arith.constant 0 : index
    %1 = vector.load %arg2[%c0_1, %c0_2] : memref<16x128xi8, #tpu.memory_space<vmem>>, vector<16x128xi8>
    %2 = arith.sitofp %1 : vector<16x128xi8> to vector<16x128xf32>
    %cst = arith.constant 2.000000e+00 : f32
    %3 = vector.broadcast %cst : f32 to vector<16x128xf32>
    %4 = arith.mulf %3, %2 : vector<16x128xf32>
    %cst_3 = arith.constant 1.000000e+00 : f32
    %5 = vector.broadcast %cst_3 : f32 to vector<16x128xf32>
    %6 = arith.subf %5, %4 : vector<16x128xf32>
    %7 = arith.mulf %6, %0 : vector<16x128xf32>
    %8 = math.absf %7 : vector<16x128xf32>
    %cst_4 = arith.constant 0.000000e+00 : f32
    %9 = vector.broadcast %cst_4 : f32 to vector<16x128xf32>
    %10 = arith.subf %9, %8 : vector<16x128xf32>
    %11 = math.exp %10 : vector<16x128xf32>
    %cst_5 = arith.constant 0.000000e+00 : f32
    %12 = vector.broadcast %cst_5 : f32 to vector<16x128xf32>
    %13 = arith.maximumf %7, %12 : vector<16x128xf32>
    %14 = math.log1p %11 : vector<16x128xf32>
    %15 = arith.addf %13, %14 : vector<16x128xf32>
    %cst_6 = arith.constant 1.000000e+00 : f32
    %16 = vector.broadcast %cst_6 : f32 to vector<16x128xf32>
    %17 = arith.addf %16, %11 : vector<16x128xf32>
    %18 = tpu.reciprocal %17 {approx = true} : vector<16x128xf32> -> vector<16x128xf32>
    %19 = arith.mulf %17, %18 : vector<16x128xf32>
    %cst_7 = arith.constant 2.000000e+00 : f32
    %20 = vector.broadcast %cst_7 : f32 to vector<16x128xf32>
    %21 = arith.subf %20, %19 : vector<16x128xf32>
    %22 = arith.mulf %18, %21 : vector<16x128xf32>
    %cst_8 = arith.constant 0.000000e+00 : f32
    %23 = vector.broadcast %cst_8 : f32 to vector<16x128xf32>
    %24 = arith.cmpf oge, %7, %23 : vector<16x128xf32>
    %25 = arith.mulf %11, %22 : vector<16x128xf32>
    %26 = arith.select %24, %22, %25 : vector<16x128xi1>, vector<16x128xf32>
    %27 = arith.mulf %26, %26 : vector<16x128xf32>
    %28 = arith.mulf %27, %15 : vector<16x128xf32>
    %29 = vector.shape_cast %28 : vector<16x128xf32> to vector<2x8x128xf32>
    %cst_9 = arith.constant dense<0.000000e+00> : vector<8x128xf32>
    %30 = vector.multi_reduction <add>, %29, %cst_9 [0] : vector<2x8x128xf32> to vector<8x128xf32>
    %c0_10 = arith.constant 0 : index
    %c0_11 = arith.constant 0 : index
    %31 = vector.load %arg3[%c0_10, %c0_11] : memref<8x128xf32, #tpu.memory_space<vmem>>, vector<8x128xf32>
    tpu.vector_store %arg3[%c0_10, %c0_11], %30 {strides = array<i32>} : memref<8x128xf32, #tpu.memory_space<vmem>>, vector<8x128xf32>,
    return
  }
  func.func @transform_0(%arg0: i32) -> (i32, i32) {
    %c0_i32 = arith.constant 0 : i32
    %c0_i32_0 = arith.constant 0 : i32
    return %arg0, %c0_i32 : i32, i32
  }
  func.func @transform_1(%arg0: i32) -> (i32, i32) {
    %c0_i32 = arith.constant 0 : i32
    %c0_i32_0 = arith.constant 0 : i32
    return %arg0, %c0_i32 : i32, i32
  }
  func.func @transform_2(%arg0: i32) -> (i32, i32) {
    %c0_i32 = arith.constant 0 : i32
    %c0_i32_0 = arith.constant 0 : i32
    return %arg0, %c0_i32 : i32, i32
  }
}

</mosaic_0001>

<llo_original>
// kernel: tpu_custom_call.1
$region0: #{tpu_custom_call.1}
  #allocation0 [shape = 'u32[]', space=smem, size = 0x4, offset = 0x4, fixed_abs, tag = 'smem constant byte address 0x4 - core index']
  #allocation1 [shape = 'u32[144,128]{1,0:T(1,128)}', space=vmem, size = 0x12000, scoped, tag = 'internal scratch']
  %s0 = inlined_call_operand.hbm [shape: f32[16,128], index: 0, kind: input, shape index: {}]
  %s1 = inlined_call_operand.hbm [shape: s8[16,128], index: 1, kind: input, shape index: {}]
  %s2 = inlined_call_operand.hbm [shape: f32[8,128], index: 2, kind: output, shape index: {}]
  %s3 = sld [smem:[#allocation0]]
  $region26: #{tpu_custom_call.1} parent=0
    _
  %s5 = ssub.s32 1, %s3
  %s6 = scalar_select 0, %s5, %s3
  $region1: #{tpu_custom_call.1} parent=0
    #allocation2 [shape = 'u8[8192]{0}', space=vmem, size = 0x2000, scoped, tag = 'input window, operand 0, single buffered']
    #allocation3 [shape = 's32[1]{0}', space=sflag, size = 0x4, scoped, tag = 'scoped memory for tpu_custom_call.1']
    #allocation4 [shape = 's32[1]{0}', space=sflag, size = 0x4, scoped, tag = 'scoped memory for tpu_custom_call.1']
    #allocation5 [shape = 'u8[2048]{0}', space=vmem, size = 0x800, scoped, tag = 'input window, operand 1, single buffered']
    #allocation6 [shape = 's32[1]{0}', space=sflag, size = 0x4, scoped, tag = 'scoped memory for tpu_custom_call.1']
    #allocation7 [shape = 'u8[4096]{0}', space=vmem, size = 0x1000, scoped, tag = 'output window, operand 0, single buffered']
    %7 = vsyncpa [#allocation3], 0
    %8 = vsyncpa [#allocation6], 0
    %9 = vsyncpa [#allocation4], 0
    // Predicated region
    $region2: #{tpu_custom_call.1} parent=1 // pred_check
      _
    $region3: #{tpu_custom_call.1} parent=1 // pred_check_branch
      %11 = sbr.rel (0) target = $region5
    $region4: #{tpu_custom_call.1} parent=1 // pred_region
      %s13 = ssub.s32 256, 256
      %14 = vsyncadd [#allocation3], %s13
      %s15 = sshll.u32 [#allocation2], 4
      %s16 = int_to_ptr.vmem [resolvable:$true] %s15
      %21 = dma.hbm_to_vmem [thread:$0]  %s0, 256, %s16, [#allocation3], 128, 128, 8
    $region5: #{tpu_custom_call.1} parent=1 // pred_fallthru
      _
    // Predicated region
    $region6: #{tpu_custom_call.1} parent=1 // pred_check
      _
    $region7: #{tpu_custom_call.1} parent=1 // pred_check_branch
      %23 = sbr.rel (0) target = $region9
    $region8: #{tpu_custom_call.1} parent=1 // pred_region
      %s25 = ssub.s32 64, 64
      %26 = vsyncadd [#allocation6], %s25
      %s27 = sshll.u32 [#allocation5], 4
      %s28 = int_to_ptr.vmem [resolvable:$true] %s27
      %33 = dma.hbm_to_vmem [thread:$0]  %s1, 64, %s28, [#allocation6], 32, 32, 2
    $region9: #{tpu_custom_call.1} parent=1 // pred_fallthru
      _
    // Predicated region
    $region10: #{tpu_custom_call.1} parent=1 // pred_check
      _
    $region11: #{tpu_custom_call.1} parent=1 // pred_check_branch
      %35 = sbr.rel (0) target = $region13
    $region12: #{tpu_custom_call.1} parent=1 // pred_region
      %36 = dma.done [#allocation3], 256
    $region13: #{tpu_custom_call.1} parent=1 // pred_fallthru
      _
    // Predicated region
    $region14: #{tpu_custom_call.1} parent=1 // pred_check
      _
    $region15: #{tpu_custom_call.1} parent=1 // pred_check_branch
      %38 = sbr.rel (0) target = $region17
    $region16: #{tpu_custom_call.1} parent=1 // pred_region
      %39 = dma.done [#allocation6], 64
    $region17: #{tpu_custom_call.1} parent=1 // pred_fallthru
      _
    %v40 = vld [vmem:[#allocation2] sm:$0xff]
    %v41 = vld [vmem:[#allocation2 + $0x8] sm:$0xff]
    %v42 = vld [vmem:[#allocation5] sm:$0x3]
    %v43 = vld [vmem:[#allocation5 + $0x2] sm:$0x3]
    %v44 = vunpack.c.0.s8 %v42
    %v45 = vunpack.c.0.s8 %v43
    %v46 = vcvt.s32.f32 %v44
    %v47 = vcvt.s32.f32 %v45
    %v48 = vmul.f32 %v46, 2.0
    %v49 = vmul.f32 %v47, 2.0
    %v50 = vsub.f32 1.0, %v48
    %v51 = vsub.f32 1.0, %v49
    %v52 = vmul.f32 %v50, %v40
    %v53 = vmul.f32 %v51, %v41
    %v54 = vand.u32 2147483647, %v52
    %v55 = vand.u32 2147483647, %v53
    %v56 = vsub.f32 0.0, %v54
    %v57 = vsub.f32 0.0, %v55
    %v58 = vmul.f32 %v56, 1.442695
    %v59 = vpow.pop %v58
    %v60 = vmul.f32 %v57, 1.442695
    %v61 = vpow.pop %v60
    %v62 = vmax.f32 %v52, 0.0
    %v63 = vmax.f32 %v53, 0.0
    %v64 = vadd.f32 %v59, 1.0
    %v65 = vlog2.pop %v64
    %v66 = vmul.f32 %v65, 0.6931472
    %v67 = vmul.f32 -0.5, %v59
    %v68 = vadd.f32 %v67, 1.0
    %v69 = vmul.f32 %v68, %v59
    %v70 = vand.u32 2147483647, %v59
    %vm71 = vcmp.lt.f32.partialorder %v70, 0.0004427343
    %v72 = vsel %vm71, %v69, %v66
    %v73 = vadd.f32 %v61, 1.0
    %v74 = vlog2.pop %v73
    %v75 = vmul.f32 %v74, 0.6931472
    %v76 = vmul.f32 -0.5, %v61
    %v77 = vadd.f32 %v76, 1.0
    %v78 = vmul.f32 %v77, %v61
    %v79 = vand.u32 2147483647, %v61
    %vm80 = vcmp.lt.f32.partialorder %v79, 0.0004427343
    %v81 = vsel %vm80, %v78, %v75
    %v82 = vadd.f32 %v62, %v72
    %v83 = vadd.f32 %v63, %v81
    %v84 = vadd.f32 %v59, 1.0
    %v85 = vadd.f32 %v61, 1.0
    %v86 = vrcp.pop %v84
    %v87 = vrcp.pop %v85
    %v88 = vmul.f32 %v84, %v86
    %v89 = vmul.f32 %v85, %v87
    %v90 = vsub.f32 2.0, %v88
    %v91 = vsub.f32 2.0, %v89
    %v92 = vmul.f32 %v86, %v90
    %v93 = vmul.f32 %v87, %v91
    %vm94 = vcmp.ge.f32.partialorder %v52, 0.0
    %vm95 = vcmp.ge.f32.partialorder %v53, 0.0
    %v96 = vmul.f32 %v59, %v92
    %v97 = vmul.f32 %v61, %v93
    %v98 = vsel %vm94, %v92, %v96
    %v99 = vsel %vm95, %v93, %v97
    %v100 = vmul.f32 %v98, %v98
    %v101 = vmul.f32 %v99, %v99
    %v102 = vmul.f32 %v100, %v82
    %v103 = vmul.f32 %v101, %v83
    %v104 = vadd.f32 %v102, %v103
    %105 = vst [vmem:[#allocation7] sm:$0xff] %v104
    // Predicated region
    $region18: #{tpu_custom_call.1} parent=1 // pred_check
      _
    $region19: #{tpu_custom_call.1} parent=1 // pred_check_branch
      %107 = sbr.rel (0) target = $region21
    $region20: #{tpu_custom_call.1} parent=1 // pred_region
      %s109 = ssub.s32 128, 128
      %110 = vsyncadd [#allocation4], %s109
      %s112 = sshll.u32 [#allocation7], 4
      %s113 = int_to_ptr.vmem [resolvable:$true] %s112
      %115 = dma.vmem_to_hbm [thread:$0]  %s113, 128, %s2, [#allocation4]
    $region21: #{tpu_custom_call.1} parent=1 // pred_fallthru
      _
    // Predicated region
    $region22: #{tpu_custom_call.1} parent=1 // pred_check
      _
    $region23: #{tpu_custom_call.1} parent=1 // pred_check_branch
      %117 = sbr.rel (0) target = $region25
    $region24: #{tpu_custom_call.1} parent=1 // pred_region
      %118 = dma.done [#allocation4], 128
    $region25: #{tpu_custom_call.1} parent=1 // pred_fallthru
      _
    %119 = vsyncpa [#allocation3], 1
    %120 = vsyncpa [#allocation6], 1
    %121 = vsyncpa [#allocation4], 1

</llo_original>
